<compile_context>
chip_gen: v5e
topology: v5e:2x2
jax: 0.10.0
libtpu: 0.0.40
codegen_flags: <defaults>
</compile_context>

<pallas_src>
import functools

import jax
import jax.numpy as jnp
from jax.experimental import pallas as pl
from jax.experimental.pallas import tpu as pltpu


LANE = 128  # TPU lane width


@functools.lru_cache(maxsize=1)
def _vmem_limit_bytes():
    """Generation-aware scoped-VMEM budget: ~3/4 of physical, capped at 100 MiB."""
    cap = 64 * 1024 * 1024  # conservative fallback (v7x per-core physical)
    try:
        info = pltpu.get_tpu_info()
        cap = int(getattr(info, "vmem_capacity_bytes", cap))
    except Exception:
        pass
    return int(min(cap * 3 // 4, 100 * 1024 * 1024))


def _pick_row_tile(m):
    """Row (M) tile: big enough to fill the MXU, but >=2 grid steps for v7x."""
    budget = _vmem_limit_bytes()
    target = 512 if budget >= (64 << 20) else 256   # v5e/v6e: bigger tiles fit
    t = min(target, pl.next_power_of_2(max(m, 8)))
    while t > 8 and pl.cdiv(m, t) < 2:              # keep >=2 steps when possible
        t //= 2
    return max(t, 8)


def _pick_k_tile(hid):
    tk = min(hid, 512)
    while hid % tk != 0:
        tk //= 2
    return max(tk, LANE) if hid >= LANE else hid


# ---------------------------------------------------------------------------
# Synthetic backbone hot path: per-token (dense + tanh) over [M, H], M = S*B.
# TODO(synk): the real module wraps a pretrained transformer backbone; this is
#             a deterministic dense+tanh stand-in.
# ---------------------------------------------------------------------------
def backbone_kernel(x_ref, mask_ref, w_ref, b_ref, out_ref, acc_ref):
    k = pl.program_id(1)

    @pl.when(k == 0)
    def _():
        acc_ref[...] = jnp.zeros_like(acc_ref)

    # fused attention-mask multiply (bf16, exact for 0/1 mask) -> MXU, f32 acc
    x = x_ref[...] * mask_ref[...]
    acc_ref[...] += jnp.dot(x, w_ref[...], preferred_element_type=jnp.float32)

    @pl.when(k == pl.num_programs(1) - 1)
    def _():
        h = acc_ref[...] + b_ref[...]                    # f32 bias add
        out_ref[...] = jnp.tanh(h).astype(out_ref.dtype)  # f32 tanh (v5e-safe)


def backbone_apply(x2d, mask2d, w, b, *, row_tile=None):
    m, hid = x2d.shape
    assert hid % LANE == 0, "hidden size must be lane-dense (multiple of 128)"
    tm = _pick_row_tile(m) if row_tile is None else row_tile
    m_pad = pl.cdiv(m, tm) * tm
    if m_pad != m:
        x2d = jnp.pad(x2d, ((0, m_pad - m), (0, 0)))
        mask2d = jnp.pad(mask2d, ((0, m_pad - m), (0, 0)))
    tk = _pick_k_tile(hid)
    grid = (m_pad // tm, hid // tk)
    # NOTE: with hid <= 512 the K axis has a single step, so the constant-index
    # weight block is DMA'd once and stays resident (Pallas only re-fetches a
    # block when its index_map result changes).  For very large H an N-split of
    # the weight/output would be the next step (TODO(synk)).
    return pl.pallas_call(
        backbone_kernel,
        out_shape=jax.ShapeDtypeStruct((m_pad, hid), jnp.bfloat16),
        grid_spec=pltpu.PrefetchScalarGridSpec(
            num_scalar_prefetch=0,
            grid=grid,
            in_specs=[
                pl.BlockSpec((tm, tk), lambda i, k: (i, k)),   # activations
                pl.BlockSpec((tm, 1), lambda i, k: (i, 0)),    # attention mask
                pl.BlockSpec((tk, hid), lambda i, k: (k, 0)),  # weight
                pl.BlockSpec((1, hid), lambda i, k: (0, 0)),   # bias
            ],
            out_specs=pl.BlockSpec((tm, hid), lambda i, k: (i, 0)),
            scratch_shapes=[pltpu.VMEM((tm, hid), jnp.float32)],
        ),
        compiler_params=pltpu.CompilerParams(
            dimension_semantics=("parallel", "arbitrary"),
            vmem_limit_bytes=_vmem_limit_bytes(),
        ),
    )(x2d, mask2d, w, b)


# ---------------------------------------------------------------------------
# ClassificationHead (+ fused MyFocalLoss).  dropout1..5 are identity in eval
# mode so averaging five identical linear passes == one linear pass.
# The head reads the CLS rows (first `batch` rows of the s-major hidden2d)
# directly from the backbone output -- no XLA slice / extra round trip.
# ---------------------------------------------------------------------------
def _padded_logits(hid_ref, w_ref, b_ref, batch):
    cls = hid_ref[0:batch, :].astype(jnp.float32)          # [B, H] f32 (fp32 head)
    return jnp.dot(cls, w_ref[...], preferred_element_type=jnp.float32) + b_ref[...]


def head_only_kernel(hid_ref, w_ref, b_ref, logits_ref, *, batch):
    logits_ref[...] = _padded_logits(hid_ref, w_ref, b_ref, batch)


def head_loss_kernel(hid_ref, w_ref, b_ref, labels_ref, logits_ref, loss_ref,
                     *, num_labels, gamma, batch):
    # --- classifier ---
    logits = _padded_logits(hid_ref, w_ref, b_ref, batch)   # [B, LPAD] f32
    logits_ref[...] = logits                                 # lane-dense store

    # --- log_softmax over the real label columns ---
    lpad = logits.shape[1]
    col = jax.lax.broadcasted_iota(jnp.int32, (1, lpad), 1)
    valid_col = col < num_labels
    x = jnp.where(valid_col, logits, -1e30)                  # mask pad lanes
    m = jnp.max(x, axis=1, keepdims=True)
    z = x - m
    lse = jnp.log(jnp.sum(jnp.exp(z), axis=1, keepdims=True))
    logpt = z - lse                                          # [B, LPAD]

    # --- vectorized label gather (one compare + one lane reduction) ---
    labels = labels_ref[...]                                 # [B, 1] int32
    onehot = (col == labels) & valid_col                     # -100 never matches
    logpt_at = jnp.sum(jnp.where(onehot, logpt, 0.0), axis=1, keepdims=True)  # [B,1]

    # --- focal modulation only at the gathered column ([B,1] transcendentals) ---
    pt = jnp.exp(logpt_at)
    omp = jnp.maximum(1.0 - pt, 0.0)                         # clamp fp rounding (pt ~ 1)
    safe = jnp.maximum(omp, 1e-30)
    powed = jnp.where(omp > 0.0, jnp.exp(gamma * jnp.log(safe)), 0.0)  # (1-pt)**gamma

    valid_row = (labels != -100).astype(jnp.float32)         # ignore_index mask
    per_row = valid_row * (-(powed * logpt_at))
    total = jnp.sum(per_row)
    count = jnp.sum(valid_row)
    # 0/0 -> NaN matches torch's mean-reduced nll_loss when every label is ignored.
    loss_ref[0, 0] = total / count


def _cls_rows_block(batch):
    return max(8, pl.cdiv(batch, 8) * 8)                     # sublane-aligned CLS block


def cls_head_apply(hidden2d, w_pad, b_pad, *, batch):
    m_pad, hid = hidden2d.shape
    lpad = w_pad.shape[1]
    rows = _cls_rows_block(batch)
    assert rows <= m_pad
    kernel = functools.partial(head_only_kernel, batch=batch)
    return pl.pallas_call(
        kernel,
        out_shape=jax.ShapeDtypeStruct((batch, lpad), jnp.float32),
        grid=(1,),
        in_specs=[
            pl.BlockSpec((rows, hid), lambda i: (0, 0)),     # CLS rows of hidden2d
            pl.BlockSpec((hid, lpad), lambda i: (0, 0)),
            pl.BlockSpec((1, lpad), lambda i: (0, 0)),
        ],
        out_specs=pl.BlockSpec((batch, lpad), lambda i: (0, 0)),
        compiler_params=pltpu.CompilerParams(
            dimension_semantics=("arbitrary",),
            vmem_limit_bytes=_vmem_limit_bytes(),
        ),
    )(hidden2d, w_pad, b_pad)


def cls_head_loss_apply(hidden2d, w_pad, b_pad, labels, *, batch, num_labels, gamma):
    m_pad, hid = hidden2d.shape
    lpad = w_pad.shape[1]
    rows = _cls_rows_block(batch)
    assert rows <= m_pad
    labels2d = labels.reshape(batch, 1).astype(jnp.int32)
    kernel = functools.partial(head_loss_kernel, num_labels=num_labels,
                               gamma=gamma, batch=batch)
    logits_pad, loss = pl.pallas_call(
        kernel,
        out_shape=(
            jax.ShapeDtypeStruct((batch, lpad), jnp.float32),
            jax.ShapeDtypeStruct((1, 1), jnp.float32),
        ),
        grid=(1,),
        in_specs=[
            pl.BlockSpec((rows, hid), lambda i: (0, 0)),     # CLS rows of hidden2d
            pl.BlockSpec((hid, lpad), lambda i: (0, 0)),
            pl.BlockSpec((1, lpad), lambda i: (0, 0)),
            pl.BlockSpec((batch, 1), lambda i: (0, 0)),      # labels vector (VMEM)
        ],
        out_specs=(
            pl.BlockSpec((batch, lpad), lambda i: (0, 0)),
            pl.BlockSpec((1, 1), lambda i: (0, 0),
                         memory_space=pltpu.MemorySpace.SMEM),
        ),
        compiler_params=pltpu.CompilerParams(
            dimension_semantics=("arbitrary",),
            vmem_limit_bytes=_vmem_limit_bytes(),
        ),
    )(hidden2d, w_pad, b_pad, labels2d)
    return logits_pad, loss[0, 0]


# ---------------------------------------------------------------------------
# Full forward (glue in plain JAX).
# ---------------------------------------------------------------------------
def model_forward(params, input_ids, attention_mask, labels=None):
    bsz, seq = input_ids.shape

    # s-major flatten: row (s, b) -> s*B + b, so the B CLS rows (s == 0) are the
    # first, contiguous rows of the 2-D activation and the head kernel can read
    # them directly via a BlockSpec.  Transposes below act on tiny int/f32 2-D
    # arrays (not on [B,S,H] tensors).
    ids_sb = jnp.transpose(input_ids).reshape(-1)                        # [S*B]
    # TODO(synk): real module wraps a pretrained transformer backbone; the
    #             embedding row-gather stays as XLA glue (data-dependent gather).
    emb = jnp.take(params["emb_table"], ids_sb, axis=0)                  # [S*B, H] bf16
    mask_sb = jnp.transpose(attention_mask).reshape(-1, 1).astype(jnp.bfloat16)

    hidden2d = backbone_apply(emb, mask_sb, params["w_bb"], params["b_bb"])

    num_labels = params["num_labels"]
    if labels is not None:
        logits_pad, loss = cls_head_loss_apply(
            hidden2d, params["w_cls_pad"], params["b_cls_pad"], labels,
            batch=bsz, num_labels=num_labels, gamma=0.5)                 # gamma=0.5 as in module
    else:
        logits_pad = cls_head_apply(hidden2d, params["w_cls_pad"],
                                    params["b_cls_pad"], batch=bsz)
        loss = None
    logits = logits_pad[:, :num_labels]                                  # strip lane padding
    return dict(loss=loss, logits=logits)


if __name__ == "__main__":
    B, S, H, NUM_LABELS, VOCAB = 2, 8, 128, 8, 64
    LPAD = LANE                                                          # classifier lane-padded

    key = jax.random.PRNGKey(0)
    k_emb, k_bb, k_cls, k_ids, k_lbl = jax.random.split(key, 5)

    # nn.Linear init in ClassificationHead: normal(0, 0.01), bias zero (kept fp32).
    w_cls = 0.01 * jax.random.normal(k_cls, (H, NUM_LABELS), jnp.float32)
    w_cls_pad = jnp.zeros((H, LPAD), jnp.float32).at[:, :NUM_LABELS].set(w_cls)
    b_cls_pad = jnp.zeros((1, LPAD), jnp.float32)

    params = dict(
        emb_table=(0.02 * jax.random.normal(k_emb, (VOCAB, H), jnp.float32)
                   ).astype(jnp.bfloat16),
        w_bb=(0.02 * jax.random.normal(k_bb, (H, H), jnp.float32)
              ).astype(jnp.bfloat16),
        b_bb=jnp.zeros((1, H), jnp.float32),
        w_cls_pad=w_cls_pad,
        b_cls_pad=b_cls_pad,
        num_labels=NUM_LABELS,
    )

    input_ids = jax.random.randint(k_ids, (B, S), 0, VOCAB, dtype=jnp.int32)
    attention_mask = jnp.ones((B, S), jnp.float32)
    labels = jax.random.randint(k_lbl, (B,), 0, NUM_LABELS, dtype=jnp.int32)

    # training-style call (labels given): fused head + focal loss
    out = model_forward(params, input_ids, attention_mask, labels=labels)
    jax.block_until_ready(out["logits"])
    jax.block_until_ready(out["loss"])

    # inference-style call (labels=None): head-only kernel
    out_infer = model_forward(params, input_ids, attention_mask, labels=None)
    jax.block_until_ready(out_infer["logits"])

    assert out["logits"].shape == (B, NUM_LABELS)
    assert out["loss"].shape == ()
    assert bool(jnp.isfinite(out["loss"]))
    assert out_infer["logits"].shape == (B, NUM_LABELS)
    assert out_infer["loss"] is None
    print("KERNEL_OK")
</pallas_src>

<mosaic_0001>
module attributes {stable_mosaic.version = 11 : i64} {
  func.func @backbone_kernel(%arg0: i32, %arg1: i32, %arg2: memref<8x128xbf16, #tpu.memory_space<vmem>>, %arg3: memref<8x1xbf16, #tpu.memory_space<vmem>>, %arg4: memref<128x128xbf16, #tpu.memory_space<vmem>>, %arg5: memref<1x128xf32, #tpu.memory_space<vmem>>, %arg6: memref<8x128xbf16, #tpu.memory_space<vmem>>, %arg7: memref<8x128xf32, #tpu.memory_space<vmem>>) attributes {dimension_semantics = [#tpu.dimension_semantics<parallel>, #tpu.dimension_semantics<arbitrary>], iteration_bounds = array<i64: 2, 1>, scalar_prefetch = 0 : i64, scratch_operands = 1 : i64, tpu.core_type = #tpu.core_type<tc>, window_params = [{transform_indices = @transform_0, window_bounds = array<i64: 8, 128>}, {transform_indices = @transform_1, window_bounds = array<i64: 8, 1>}, {transform_indices = @transform_2, window_bounds = array<i64: 128, 128>}, {pipeline_mode = #tpu.pipeline_mode<synchronous>, transform_indices = @transform_3, window_bounds = array<i64: 1, 128>}, {transform_indices = @transform_4, window_bounds = array<i64: 8, 128>}]} {
    %c0_i32 = arith.constant 0 : i32
    %0 = arith.cmpi eq, %arg1, %c0_i32 : i32
    %1 = arith.extui %0 : i1 to i32
    %c0_i32_0 = arith.constant 0 : i32
    %2 = arith.cmpi ne, %1, %c0_i32_0 : i32
    scf.if %2 {
      %cst_12 = arith.constant 0.000000e+00 : f32
      %15 = vector.broadcast %cst_12 : f32 to vector<8x128xf32>
      %c0_13 = arith.constant 0 : index
      %c0_14 = arith.constant 0 : index
      %16 = vector.load %arg7[%c0_13, %c0_14] : memref<8x128xf32, #tpu.memory_space<vmem>>, vector<8x128xf32>
      tpu.vector_store %arg7[%c0_13, %c0_14], %15 {strides = array<i32>} : memref<8x128xf32, #tpu.memory_space<vmem>>, vector<8x128xf32>,
    } else {
    }
    %c0 = arith.constant 0 : index
    %c0_1 = arith.constant 0 : index
    %3 = vector.load %arg2[%c0, %c0_1] : memref<8x128xbf16, #tpu.memory_space<vmem>>, vector<8x128xbf16>
    %c0_2 = arith.constant 0 : index
    %c0_3 = arith.constant 0 : index
    %4 = vector.load %arg3[%c0_2, %c0_3] : memref<8x1xbf16, #tpu.memory_space<vmem>>, vector<8x1xbf16>
    %5 = vector.broadcast %4 : vector<8x1xbf16> to vector<8x128xbf16>
    %6 = arith.mulf %3, %5 : vector<8x128xbf16>
    %c0_4 = arith.constant 0 : index
    %c0_5 = arith.constant 0 : index
    %7 = vector.load %arg7[%c0_4, %c0_5] : memref<8x128xf32, #tpu.memory_space<vmem>>, vector<8x128xf32>
    %c0_6 = arith.constant 0 : index
    %c0_7 = arith.constant 0 : index
    %8 = vector.load %arg4[%c0_6, %c0_7] : memref<128x128xbf16, #tpu.memory_space<vmem>>, vector<128x128xbf16>
    %cst = arith.constant dense<0.000000e+00> : vector<8x128xf32>
    %9 = tpu.matmul %6, %8, %cst {dimension_numbers = #tpu.dot_dimension_numbers<[1], [0], [0], [1], [0, 0, 1, 1], [], []>} : vector<8x128xbf16>, vector<128x128xbf16>, vector<8x128xf32> -> vector<8x128xf32>
    %10 = arith.addf %7, %9 : vector<8x128xf32>
    %c0_8 = arith.constant 0 : index
    %c0_9 = arith.constant 0 : index
    %11 = vector.load %arg7[%c0_8, %c0_9] : memref<8x128xf32, #tpu.memory_space<vmem>>, vector<8x128xf32>
    tpu.vector_store %arg7[%c0_8, %c0_9], %10 {strides = array<i32>} : memref<8x128xf32, #tpu.memory_space<vmem>>, vector<8x128xf32>,
    %c0_i32_10 = arith.constant 0 : i32
    %12 = arith.cmpi eq, %arg1, %c0_i32_10 : i32
    %13 = arith.extui %12 : i1 to i32
    %c0_i32_11 = arith.constant 0 : i32
    %14 = arith.cmpi ne, %13, %c0_i32_11 : i32
    scf.if %14 {
      %c0_12 = arith.constant 0 : index
      %c0_13 = arith.constant 0 : index
      %15 = vector.load %arg7[%c0_12, %c0_13] : memref<8x128xf32, #tpu.memory_space<vmem>>, vector<8x128xf32>
      %c0_14 = arith.constant 0 : index
      %c0_15 = arith.constant 0 : index
      %16 = vector.load %arg5[%c0_14, %c0_15] : memref<1x128xf32, #tpu.memory_space<vmem>>, vector<1x128xf32>
      %17 = vector.broadcast %16 : vector<1x128xf32> to vector<8x128xf32>
      %18 = arith.addf %15, %17 : vector<8x128xf32>
      %19 = math.tanh %18 : vector<8x128xf32>
      %20 = arith.truncf %19 : vector<8x128xf32> to vector<8x128xbf16>
      %c0_16 = arith.constant 0 : index
      %c0_17 = arith.constant 0 : index
      %21 = vector.load %arg6[%c0_16, %c0_17] : memref<8x128xbf16, #tpu.memory_space<vmem>>, vector<8x128xbf16>
      tpu.vector_store %arg6[%c0_16, %c0_17], %20 {strides = array<i32>} : memref<8x128xbf16, #tpu.memory_space<vmem>>, vector<8x128xbf16>,
    } else {
    }
    return
  }
  func.func @transform_0(%arg0: i32, %arg1: i32) -> (i32, i32) {
    %c0_i32 = arith.constant 0 : i32
    return %arg0, %arg1 : i32, i32
  }
  func.func @transform_1(%arg0: i32, %arg1: i32) -> (i32, i32) {
    %c0_i32 = arith.constant 0 : i32
    %c0_i32_0 = arith.constant 0 : i32
    return %arg0, %c0_i32 : i32, i32
  }
  func.func @transform_2(%arg0: i32, %arg1: i32) -> (i32, i32) {
    %c0_i32 = arith.constant 0 : i32
    %c0_i32_0 = arith.constant 0 : i32
    return %arg1, %c0_i32 : i32, i32
  }
  func.func @transform_3(%arg0: i32, %arg1: i32) -> (i32, i32) {
    %c0_i32 = arith.constant 0 : i32
    %c0_i32_0 = arith.constant 0 : i32
    %c0_i32_1 = arith.constant 0 : i32
    return %c0_i32, %c0_i32_0 : i32, i32
  }
  func.func @transform_4(%arg0: i32, %arg1: i32) -> (i32, i32) {
    %c0_i32 = arith.constant 0 : i32
    %c0_i32_0 = arith.constant 0 : i32
    return %arg0, %c0_i32 : i32, i32
  }
}

</mosaic_0001>

<llo_original>
// kernel: tpu_custom_call.1
$region0: #{tpu_custom_call.1}
  #allocation0 [shape = 'u32[]', space=smem, size = 0x4, offset = 0x4, fixed_abs, tag = 'smem constant byte address 0x4 - core index']
  #allocation1 [shape = 'u32[72,128]{1,0:T(1,128)}', space=vmem, size = 0x9000, scoped, tag = 'internal scratch']
  #allocation2 [shape = 'f32[8,128]{1,0:T(8,128)}', space=vmem, size = 0x1000, scoped, tag = 'scratch operand']
  %s0 = inlined_call_operand.vmem [shape: bf16[16,128], index: 0, kind: input, shape index: {}]
  %s1 = inlined_call_operand.vmem [shape: bf16[16,1], index: 1, kind: input, shape index: {}]
  %s2 = inlined_call_operand.hbm [shape: bf16[128,128], index: 2, kind: input, shape index: {}]
  %s3 = inlined_call_operand.vmem [shape: f32[1,128], index: 3, kind: input, shape index: {}]
  %s4 = inlined_call_operand.hbm [shape: bf16[16,128], index: 4, kind: output, shape index: {}]
  %s5 = sld [smem:[#allocation0]]
  $region61: #{tpu_custom_call.1} parent=0
    _
  %s7 = ssub.s32 1, %s5
  %s8 = scalar_select 0, %s7, %s5
  $region1: #{tpu_custom_call.1} parent=0
    #allocation3 [shape = 'u8[32768]{0}', space=vmem, size = 0x8000, scoped, tag = 'input window, operand 2, single buffered']
    #allocation4 [shape = 's32[2]{0}', space=sflag, size = 0x8, scoped, tag = 'scoped memory for tpu_custom_call.1']
    #allocation5 [shape = 's32[2]{0}', space=sflag, size = 0x8, scoped, tag = 'scoped memory for tpu_custom_call.1']
    #allocation6 [shape = 'u8[4096]{0}', space=vmem, size = 0x1000, scoped, tag = 'output window, operand 0']
    %9 = vsyncpa [#allocation4], 0
    %10 = vsyncpa [#allocation5], 0
    %s11 = scalar_lea.sflag [#allocation5], 1
    %12 = vsyncpa %s11, 0
    loop: start=0, step=1, limit=4
    $region2: #{tpu_custom_call.1} parent=1 // loop_pre_header
      _
    $region3: #{tpu_custom_call.1} parent=1 // loop_header
      %s14 = sphi 0, %s18
      %p15 = scmp.ge.s32.totalorder %s14, 4
      %s21 = sphi 0, %s33
      %s22 = sphi 0, %s29
      %s23 = sphi 0, %s21
      %s24 = sphi 0, %s22
      %s25 = sphi 0, %s23
      %s26 = sphi 0, %s24
      %s38 = sphi 0, %s40
      %s41 = sphi 0, %s38
      %s42 = sphi 0, %s41
      %s58 = sphi 0, %s42
      %s64 = sphi 0, %s66
      %s67 = sphi 0, %s64
      %s68 = sphi 0, %s67
      %s84 = sphi 0, %s68
      %s90 = sphi 0, %s92
      %s93 = sphi 0, %s90
      %s94 = sphi 0, %s93
      %s110 = sphi 0, %s94
      %s114 = sphi 0, %s114
      %s116 = sphi 0, %s114
      %s117 = sphi 0, %s116
      %s131 = sphi 0, %s117
      %s137 = sphi 0, %s139
      %s140 = sphi 0, %s137
      %s141 = sphi 0, %s140
      %s157 = sphi 0, %s141
    $region4: #{tpu_custom_call.1} parent=1 // loop_header_branch
      %17 = sbr.rel (%p15) target = $region8
    $region5: #{tpu_custom_call.1} parent=1 // loop_body
      %s19 = ssub.s32 %s14, 1
      %s20 = ssub.s32 %s14, 2
      %s27 = sadd.s32 1, %s22
      %p28 = scmp.ge.s32.totalorder %s27, 1
      %s29 = scalar_select %p28, 0, %s27
      %s30 = sadd.s32 1, %s21
      %s31 = scalar_select %p28, %s30, %s21
      %p32 = scmp.ge.s32.totalorder %s31, 2
      %s33 = scalar_select %p32, 0, %s31
      %s34 = ssub.s32 %s21, %s33
      %s35 = ssub.s32 %s22, %s29
      %s36 = sor.u32 %s34, %s35
      %p37 = scmp.eq.s32.totalorder %s36, 0
      %s39 = sadd.s32 %s38, 1
      %s40 = scalar_select %p37, %s38, %s39
      %p43 = pneg %p37
      %p44 = scmp.eq.s32.totalorder %s14, 1
      %p45 = por %p43, %p44
      %p46 = scmp.ne.s32.totalorder %s38, %s41
      %p47 = scmp.eq.s32.totalorder %s14, 0
      %p48 = por %p46, %p47
      %p49 = scmp.ne.s32.totalorder %s38, %s41
      %p50 = scmp.eq.s32.totalorder %s19, 1
      %p51 = por %p49, %p50
      %p52 = scmp.ne.s32.totalorder %s41, %s42
      %p53 = scmp.eq.s32.totalorder %s19, 0
      %p54 = por %p52, %p53
      %p55 = scmp.ne.s32.totalorder %s41, %s42
      %p56 = scmp.eq.s32.totalorder %s20, 1
      %p57 = por %p55, %p56
      %p59 = scmp.ne.s32.totalorder %s42, %s58
      %p60 = scmp.eq.s32.totalorder %s20, 0
      %p61 = por %p59, %p60
      %s62 = ssub.s32 %s21, %s33
      %p63 = scmp.eq.s32.totalorder %s62, 0
      %s65 = sadd.s32 %s64, 1
      %s66 = scalar_select %p63, %s64, %s65
      %p69 = pneg %p63
      %p70 = scmp.eq.s32.totalorder %s14, 1
      %p71 = por %p69, %p70
      %p72 = scmp.ne.s32.totalorder %s64, %s67
      %p73 = scmp.eq.s32.totalorder %s14, 0
      %p74 = por %p72, %p73
      %p75 = scmp.ne.s32.totalorder %s64, %s67
      %p76 = scmp.eq.s32.totalorder %s19, 1
      %p77 = por %p75, %p76
      %p78 = scmp.ne.s32.totalorder %s67, %s68
      %p79 = scmp.eq.s32.totalorder %s19, 0
      %p80 = por %p78, %p79
      %p81 = scmp.ne.s32.totalorder %s67, %s68
      %p82 = scmp.eq.s32.totalorder %s20, 1
      %p83 = por %p81, %p82
      %p85 = scmp.ne.s32.totalorder %s68, %s84
      %p86 = scmp.eq.s32.totalorder %s20, 0
      %p87 = por %p85, %p86
      %s88 = ssub.s32 %s22, %s29
      %p89 = scmp.eq.s32.totalorder %s88, 0
      %s91 = sadd.s32 %s90, 1
      %s92 = scalar_select %p89, %s90, %s91
      %p95 = pneg %p89
      %p96 = scmp.eq.s32.totalorder %s14, 1
      %p97 = por %p95, %p96
      %p98 = scmp.ne.s32.totalorder %s90, %s93
      %p99 = scmp.eq.s32.totalorder %s14, 0
      %p100 = por %p98, %p99
      %p101 = scmp.ne.s32.totalorder %s90, %s93
      %p102 = scmp.eq.s32.totalorder %s19, 1
      %p103 = por %p101, %p102
      %p104 = scmp.ne.s32.totalorder %s93, %s94
      %p105 = scmp.eq.s32.totalorder %s19, 0
      %p106 = por %p104, %p105
      %p107 = scmp.ne.s32.totalorder %s93, %s94
      %p108 = scmp.eq.s32.totalorder %s20, 1
      %p109 = por %p107, %p108
      %p111 = scmp.ne.s32.totalorder %s94, %s110
      %p112 = scmp.eq.s32.totalorder %s20, 0
      %p113 = por %p111, %p112
      %s115 = sadd.s32 %s114, 1
      %p118 = scmp.eq.s32.totalorder %s14, 1
      %p119 = scmp.ne.s32.totalorder %s114, %s116
      %p120 = scmp.eq.s32.totalorder %s14, 0
      %p121 = por %p119, %p120
      %p122 = scmp.ne.s32.totalorder %s114, %s116
      %p123 = scmp.eq.s32.totalorder %s19, 1
      %p124 = por %p122, %p123
      %p125 = scmp.ne.s32.totalorder %s116, %s117
      %p126 = scmp.eq.s32.totalorder %s19, 0
      %p127 = por %p125, %p126
      %p128 = scmp.ne.s32.totalorder %s116, %s117
      %p129 = scmp.eq.s32.totalorder %s20, 1
      %p130 = por %p128, %p129
      %p132 = scmp.ne.s32.totalorder %s117, %s131
      %p133 = scmp.eq.s32.totalorder %s20, 0
      %p134 = por %p132, %p133
      %s135 = ssub.s32 %s21, %s33
      %p136 = scmp.eq.s32.totalorder %s135, 0
      %s138 = sadd.s32 %s137, 1
      %s139 = scalar_select %p136, %s137, %s138
      %p142 = pneg %p136
      %p143 = scmp.eq.s32.totalorder %s14, 1
      %p144 = por %p142, %p143
      %p145 = scmp.ne.s32.totalorder %s137, %s140
      %p146 = scmp.eq.s32.totalorder %s14, 0
      %p147 = por %p145, %p146
      %p148 = scmp.ne.s32.totalorder %s137, %s140
      %p149 = scmp.eq.s32.totalorder %s19, 1
      %p150 = por %p148, %p149
      %p151 = scmp.ne.s32.totalorder %s140, %s141
      %p152 = scmp.eq.s32.totalorder %s19, 0
      %p153 = por %p151, %p152
      %p154 = scmp.ne.s32.totalorder %s140, %s141
      %p155 = scmp.eq.s32.totalorder %s20, 1
      %p156 = por %p154, %p155
      %p158 = scmp.ne.s32.totalorder %s141, %s157
      %p159 = scmp.eq.s32.totalorder %s20, 0
      %p160 = por %p158, %p159
      %p161 = scmp.le.s32.totalorder 1, %s14
      %p162 = scmp.lt.s32.totalorder %s14, 3
      %p163 = pnand %p161, %p162
      %p164 = pneg %p163
      // Predicated region
      $region9: #{tpu_custom_call.1} parent=5 // pred_check
        _
      $region10: #{tpu_custom_call.1} parent=5 // pred_check_branch
        %166 = sbr.rel (%p163) target = $region12
      $region11: #{tpu_custom_call.1} parent=5 // pred_region
        %s167 = ssub.s32 %s14, 1
        // Predicated region
        $region13: #{tpu_custom_call.1} parent=11 // pred_check
          %p168 = pneg %p106
        $region14: #{tpu_custom_call.1} parent=11 // pred_check_branch
          %170 = sbr.rel (%p168) target = $region16
        $region15: #{tpu_custom_call.1} parent=11 // pred_region
          %s171 = smul.u32 16, %s24
          %173 = vsyncadd [#allocation4], 0
          %s174 = smul.addr %s171, 4
          %s175 = scalar_lea.hbm %s2, %s174
          %s176 = sshll.u32 %s175, 4
          %s177 = int_to_ptr.hbm [resolvable:$true] %s176
          %s178 = sshll.u32 [#allocation3], 4
          %s179 = int_to_ptr.vmem [resolvable:$true] %s178
          %184 = dma.hbm_to_vmem [thread:$0]  %s177, 1024, %s179, [#allocation4], 64, 64, 4
        $region16: #{tpu_custom_call.1} parent=11 // pred_fallthru
          _
        // Predicated region
        $region17: #{tpu_custom_call.1} parent=11 // pred_check
          %p185 = pneg %p127
        $region18: #{tpu_custom_call.1} parent=11 // pred_check_branch
          %187 = sbr.rel (%p185) target = $region20
        $region19: #{tpu_custom_call.1} parent=11 // pred_region
          _
        $region20: #{tpu_custom_call.1} parent=11 // pred_fallthru
          _
      $region12: #{tpu_custom_call.1} parent=5 // pred_fallthru
        _
      %p188 = scmp.lt.s32.totalorder %s14, 2
      // Predicated region
      $region21: #{tpu_custom_call.1} parent=5 // pred_check
        %p189 = pneg %p188
      $region22: #{tpu_custom_call.1} parent=5 // pred_check_branch
        %191 = sbr.rel (%p189) target = $region24
      $region23: #{tpu_custom_call.1} parent=5 // pred_region
        // Predicated region
        $region25: #{tpu_custom_call.1} parent=23 // pred_check
          %p192 = pneg %p48
        $region26: #{tpu_custom_call.1} parent=23 // pred_check_branch
          %194 = sbr.rel (%p192) target = $region28
        $region27: #{tpu_custom_call.1} parent=23 // pred_region
          %p195 = scmp.lt.s32.totalorder %s21, 1
          %s196 = scalar_select %p195, %s21, 1
          %p197 = scmp.lt.s32.totalorder %s22, 0
          %s198 = scalar_select %p197, %s22, 0
          %s199 = sadd.s32 %s198, %s196
          %s200 = smul.addr %s199, 4
          %s201 = scalar_lea.vmem %s0, %s200
        $region28: #{tpu_custom_call.1} parent=23 // pred_fallthru
          _
        // Predicated region
        $region29: #{tpu_custom_call.1} parent=23 // pred_check
          %p202 = pneg %p74
        $region30: #{tpu_custom_call.1} parent=23 // pred_check_branch
          %204 = sbr.rel (%p202) target = $region32
        $region31: #{tpu_custom_call.1} parent=23 // pred_region
          %p205 = scmp.lt.s32.totalorder %s21, 1
          %s206 = scalar_select %p205, %s21, 1
          %s207 = smul.addr %s206, 4
          %s208 = scalar_lea.vmem %s1, %s207
        $region32: #{tpu_custom_call.1} parent=23 // pred_fallthru
          _
      $region24: #{tpu_custom_call.1} parent=5 // pred_fallthru
        _
      %p209 = scmp.le.s32.totalorder 1, %s14
      %p210 = scmp.lt.s32.totalorder %s14, 3
      %p211 = pnand %p209, %p210
      %p212 = pneg %p211
      // Predicated region
      $region33: #{tpu_custom_call.1} parent=5 // pred_check
        _
      $region34: #{tpu_custom_call.1} parent=5 // pred_check_branch
        %214 = sbr.rel (%p211) target = $region36
      $region35: #{tpu_custom_call.1} parent=5 // pred_region
        %s215 = ssub.s32 %s14, 1
        // Predicated region
        $region37: #{tpu_custom_call.1} parent=35 // pred_check
          %p216 = pneg %p106
        $region38: #{tpu_custom_call.1} parent=35 // pred_check_branch
          %218 = sbr.rel (%p216) target = $region40
        $region39: #{tpu_custom_call.1} parent=35 // pred_region
          %220 = dma.done [#allocation4], 1024
        $region40: #{tpu_custom_call.1} parent=35 // pred_fallthru
          _
        %p221 = scmp.lt.s32.totalorder %s23, 1
        %s222 = scalar_select %p221, %s23, 1
        %p223 = scmp.lt.s32.totalorder %s24, 0
        %s224 = scalar_select %p223, %s24, 0
        %s225 = sadd.s32 %s224, %s222
        %s226 = smul.addr %s225, 4
        %s227 = scalar_lea.vmem %s0, %s226
        %p228 = pneg %p54
        %p229 = pneg %p51
        %p230 = scmp.lt.s32.totalorder %s23, 1
        %s231 = scalar_select %p230, %s23, 1
        %s232 = smul.addr %s231, 4
        %s233 = scalar_lea.vmem %s1, %s232
        %p234 = pneg %p80
        %p235 = pneg %p77
        %p236 = pneg %p106
        %p237 = pneg %p103
        %p238 = pneg %p127
        %p239 = pneg %p124
        %p240 = pneg %p153
        %p241 = pneg %p150
        %s242 = sand.u32 %s140, 1
        %s243 = scalar_lea.sflag [#allocation5], %s242
        %s244 = sand.u32 %s140, 1
        %s245 = smul.addr %s244, 4
        %s246 = scalar_lea.vmem [#allocation6], %s245
        %p247 = scmp.lt.s32.totalorder %s23, 1
        %s248 = scalar_select %p247, %s23, 1
        %p249 = scmp.lt.s32.totalorder %s24, 0
        %s250 = scalar_select %p249, %s24, 0
        %s251 = sadd.s32 %s250, %s248
        %s252 = smul.addr %s251, 4
        %s253 = scalar_lea.vmem %s0, %s252
        %p254 = scmp.lt.s32.totalorder %s23, 1
        %s255 = scalar_select %p254, %s23, 1
        %s256 = smul.addr %s255, 4
        %s257 = scalar_lea.vmem %s1, %s256
        %s258 = smul.u32 16, %s24
        %p259 = scmp.eq.s32.totalorder %s24, 0
        // Predicated region
        $region41: #{tpu_custom_call.1} parent=35 // pred_check
          %p260 = pneg %p259
        $region42: #{tpu_custom_call.1} parent=35 // pred_check_branch
          %262 = sbr.rel (%p260) target = $region44
        $region43: #{tpu_custom_call.1} parent=35 // pred_region
          %263 = vst [vmem:[#allocation2] sm:$0xff] 0.0
        $region44: #{tpu_custom_call.1} parent=35 // pred_fallthru
          _
        %v264 = vld [vmem:[%s253] sm:$0xf]
        %v265 = vld [vmem:[%s257] sm:$0xf]
        %267 = vset.pattern.permute.xlu0 0
        %268 = vperm.xlu0 %267, %v265
        %v269 = vpop.permute.xlu0 %268
        %v272 = vunpack.c.l.s4 839922192
        %v273 = vunpack.c.0.s8 %v272
        %v274 = vperm.slane %v269, %v273
        %v275 = vunpack.c.l.bf16 %v264
        %v276 = vunpack.c.l.bf16 %v274
        %v277 = vmul.f32 %v275, %v276
        %v278 = vpack.c.bf16 %v277, %v277
        %v279 = vld [vmem:[#allocation2] sm:$0xff]
        %v280 = vld [vmem:[#allocation3] sm:$0xf]
        %v281 = vld [vmem:[#allocation3 + $0x4] sm:$0xf]
        %v282 = vld [vmem:[#allocation3 + $0x8] sm:$0xf]
        %v283 = vld [vmem:[#allocation3 + $0xc] sm:$0xf]
        %v284 = vld [vmem:[#allocation3 + $0x10] sm:$0xf]
        %v285 = vld [vmem:[#allocation3 + $0x14] sm:$0xf]
        %v286 = vld [vmem:[#allocation3 + $0x18] sm:$0xf]
        %v287 = vld [vmem:[#allocation3 + $0x1c] sm:$0xf]
        %v288 = vld [vmem:[#allocation3 + $0x20] sm:$0xf]
        %v289 = vld [vmem:[#allocation3 + $0x24] sm:$0xf]
        %v290 = vld [vmem:[#allocation3 + $0x28] sm:$0xf]
        %v291 = vld [vmem:[#allocation3 + $0x2c] sm:$0xf]
        %v292 = vld [vmem:[#allocation3 + $0x30] sm:$0xf]
        %v293 = vld [vmem:[#allocation3 + $0x34] sm:$0xf]
        %v294 = vld [vmem:[#allocation3 + $0x38] sm:$0xf]
        %v295 = vld [vmem:[#allocation3 + $0x3c] sm:$0xf]
        %v312 = vunpack.c.l.b16 %v280
        %v313 = vunpack.c.l.b16 %v281
        %v314 = vunpack.c.l.b16 %v282
        %v315 = vunpack.c.l.b16 %v283
        %v316 = vunpack.c.l.b16 %v284
        %v317 = vunpack.c.l.b16 %v285
        %v318 = vunpack.c.l.b16 %v286
        %v319 = vunpack.c.l.b16 %v287
        %v320 = vunpack.c.l.b16 %v288
        %v321 = vunpack.c.l.b16 %v289
        %v322 = vunpack.c.l.b16 %v290
        %v323 = vunpack.c.l.b16 %v291
        %v324 = vunpack.c.l.b16 %v292
        %v325 = vunpack.c.l.b16 %v293
        %v326 = vunpack.c.l.b16 %v294
        %v327 = vunpack.c.l.b16 %v295
        %v328 = vpack.c.b16 %v313, %v312
        %v329 = vpack.c.b16 %v315, %v314
        %v330 = vpack.c.b16 %v317, %v316
        %v331 = vpack.c.b16 %v319, %v318
        %v332 = vpack.c.b16 %v321, %v320
        %v333 = vpack.c.b16 %v323, %v322
        %v334 = vpack.c.b16 %v325, %v324
        %v335 = vpack.c.b16 %v327, %v326
        %344 = vmatpush.bf16.msra.mxu0 %v335
        %345 = vmatpush.bf16.msra.mxu0 %v334
        %346 = vmatpush.bf16.msra.mxu0 %v333
        %347 = vmatpush.bf16.msra.mxu0 %v332
        %348 = vmatpush.bf16.msra.mxu0 %v331
        %349 = vmatpush.bf16.msra.mxu0 %v330
        %350 = vmatpush.bf16.msra.mxu0 %v329
        %351 = vmatpush.bf16.msra.mxu0 %v328
        %352 = vmatmul.bf16.gmra.mxu0 %v278
        %v353 = vpop.f32.mrf.mxu0
        %v354 = vadd.f32 0.0, %v353
        %v355 = vpop.f32.mrf.mxu0
        %356 = vdwg.mxu0
        %v357 = vadd.f32 %v279, %v354
        %358 = vst [vmem:[#allocation2] sm:$0xff] %v357
        // Predicated region
        $region45: #{tpu_custom_call.1} parent=35 // pred_check
          %p359 = pneg %p259
        $region46: #{tpu_custom_call.1} parent=35 // pred_check_branch
          %361 = sbr.rel (%p359) target = $region48
        $region47: #{tpu_custom_call.1} parent=35 // pred_region
          %v362 = vld [vmem:[#allocation2] sm:$0xff]
          %v363 = vld [vmem:[%s3] sm:$0x1]
          %v365 = vperm.slane %v363, 0
          %v367 = vadd.f32 %v362, %v365
          %v368 = vtanh.pop %v367
          %v369 = vpack.c.bf16 %v368, %v368
          %370 = vst [vmem:[%s246] sm:$0xf] %v369
        $region48: #{tpu_custom_call.1} parent=35 // pred_fallthru
          _
        %s371 = sand.u32 %s140, 1
        %s372 = scalar_lea.sflag [#allocation5], %s371
        %s373 = sand.u32 %s140, 1
        %s374 = smul.addr %s373, 4
        %s375 = scalar_lea.vmem [#allocation6], %s374
        // Predicated region
        $region49: #{tpu_custom_call.1} parent=35 // pred_check
          %p376 = pneg %p150
        $region50: #{tpu_custom_call.1} parent=35 // pred_check_branch
          %378 = sbr.rel (%p376) target = $region52
        $region51: #{tpu_custom_call.1} parent=35 // pred_region
          %380 = vsyncadd %s372, 0
          %s381 = smul.addr %s23, 4
          %s382 = scalar_lea.hbm %s4, %s381
          %s384 = sshll.u32 %s375, 4
          %s385 = int_to_ptr.vmem [resolvable:$true] %s384
          %s386 = sshll.u32 %s382, 4
          %s387 = int_to_ptr.hbm [resolvable:$true] %s386
          %389 = dma.vmem_to_hbm [thread:$0]  %s385, 64, %s387, %s372
        $region52: #{tpu_custom_call.1} parent=35 // pred_fallthru
          _
      $region36: #{tpu_custom_call.1} parent=5 // pred_fallthru
        _
      %p390 = scmp.le.s32.totalorder 2, %s14
      // Predicated region
      $region53: #{tpu_custom_call.1} parent=5 // pred_check
        %p391 = pneg %p390
      $region54: #{tpu_custom_call.1} parent=5 // pred_check_branch
        %393 = sbr.rel (%p391) target = $region56
      $region55: #{tpu_custom_call.1} parent=5 // pred_region
        %s394 = ssub.s32 %s14, 2
        // Predicated region
        $region57: #{tpu_custom_call.1} parent=55 // pred_check
          %p395 = pneg %p156
        $region58: #{tpu_custom_call.1} parent=55 // pred_check_branch
          %397 = sbr.rel (%p395) target = $region60
        $region59: #{tpu_custom_call.1} parent=55 // pred_region
          %s398 = sand.u32 %s141, 1
          %s399 = scalar_lea.sflag [#allocation5], %s398
          %s400 = sand.u32 %s141, 1
          %s401 = smul.addr %s400, 4
          %s402 = scalar_lea.vmem [#allocation6], %s401
          %404 = dma.done %s399, 64
        $region60: #{tpu_custom_call.1} parent=55 // pred_fallthru
          _
      $region56: #{tpu_custom_call.1} parent=5 // pred_fallthru
        _
    $region6: #{tpu_custom_call.1} parent=1 // loop_footer
      %s18 = sadd.s32 1, %s14
    $region7: #{tpu_custom_call.1} parent=1 // loop_footer_branch
      %13 = sbr.rel target = $region3
    $region8: #{tpu_custom_call.1} parent=1 // loop_exit
      _
    %405 = vsyncpa [#allocation4], 1
    %s406 = scalar_lea.sflag [#allocation4], 1
    %407 = vsyncpa %s406, 1
    %408 = vsyncpa [#allocation5], 1
    %s409 = scalar_lea.sflag [#allocation5], 1
    %410 = vsyncpa %s409, 1

</llo_original>
